<compile_context>
chip_gen: v7x
topology: tpu7x:2x2x1
jax: 0.10.0
libtpu: 0.0.40
codegen_flags: <defaults>
</compile_context>

<pallas_src>
import functools

import jax
import jax.numpy as jnp
from jax.experimental import pallas as pl
from jax.experimental.pallas import tpu as pltpu


def conv_bn_lrelu_kernel(p_ref, w_ref, gamma_ref, beta_ref, o_ref, *,
                         eps, negative_slope):
    """Fused: per-image im2col matmul (MXU) -> batch-norm train stats (two-pass
    variance) -> affine + LeakyReLU -> lane-dense NCHW store. Whole batch per call."""
    n = p_ref.shape[0]
    hw = p_ref.shape[2]
    w = w_ref[...]                                                  # (Cout, CKKp)

    # Conv for every image: one MXU matmul each, f32 accumulate, lane-dense (Cout, HW).
    ys = [jnp.dot(w, p_ref[i], preferred_element_type=jnp.float32)  # (Cout, HW)
          for i in range(n)]

    # BatchNorm training statistics over (N, H, W) per channel.
    inv_count = 1.0 / float(n * hw)
    mean = sum(jnp.sum(y, axis=1, keepdims=True) for y in ys) * inv_count          # (Cout,1)
    var = sum(jnp.sum((y - mean) * (y - mean), axis=1, keepdims=True)
              for y in ys) * inv_count                                              # (Cout,1)

    scale = gamma_ref[...] * jax.lax.rsqrt(var + eps)               # (Cout, 1)
    shift = beta_ref[...] - mean * scale                            # (Cout, 1)

    # Fused BN affine + LeakyReLU, written exactly once (unmasked, HW multiple of 128).
    for i in range(n):
        z = ys[i] * scale + shift
        o_ref[i] = jnp.where(z >= 0, z, negative_slope * z).astype(o_ref.dtype)


def conv_block_forward(x_nchw, w_oihw, gamma, beta, *, stride=1,
                       eps=1e-5, negative_slope=0.2):
    assert stride == 1, "padding='same' in PyTorch Conv2d requires stride=1"
    N, Cin, H, W = x_nchw.shape
    Cout, Cin_w, K, K2 = w_oihw.shape
    assert Cin_w == Cin and K == K2
    HW = H * W
    CKK = Cin * K * K
    CKKp = ((CKK + 7) // 8) * 8          # sublane-align the MXU contraction dim

    # --- layout plumbing in the wrapper: 'same' pad + im2col (pure data movement) ---
    x = x_nchw.astype(jnp.float32)
    pad_lo = (K - 1) // 2
    pad_hi = (K - 1) - pad_lo
    xp = jnp.pad(x, ((0, 0), (0, 0), (pad_lo, pad_hi), (pad_lo, pad_hi)))
    cols = [xp[:, :, kh:kh + H, kw:kw + W] for kh in range(K) for kw in range(K)]
    patches = jnp.stack(cols, axis=2).reshape(N, CKK, HW)           # (N, Cin*K*K, H*W)
    patches = jnp.pad(patches, ((0, 0), (0, CKKp - CKK), (0, 0)))   # zero-pad CKK -> CKKp
    # OIHW flattening (cin*K*K + kh*K + kw) matches the patch ordering above.
    w2 = jnp.pad(w_oihw.astype(jnp.float32).reshape(Cout, CKK),
                 ((0, 0), (0, CKKp - CKK)))                         # (Cout, CKKp)

    vmem = lambda: pl.BlockSpec(memory_space=pltpu.MemorySpace.VMEM)
    out_flat = pl.pallas_call(
        functools.partial(conv_bn_lrelu_kernel, eps=eps,
                          negative_slope=negative_slope),
        out_shape=jax.ShapeDtypeStruct((N, Cout, HW), jnp.float32),
        in_specs=[vmem(), vmem(), vmem(), vmem()],
        out_specs=vmem(),
    )(patches, w2,
      gamma.astype(jnp.float32).reshape(Cout, 1),
      beta.astype(jnp.float32).reshape(Cout, 1))

    # (N, Cout, H*W) -> (N, Cout, H, W) is a free metadata reshape (already NCHW order).
    return out_flat.reshape(N, Cout, H, W)


def _reference_forward(x_nchw, w_oihw, gamma, beta, eps=1e-5, slope=0.2):
    # Pure-JAX reference of the same semantics (for the self-check).
    K = w_oihw.shape[-1]
    pad_lo = (K - 1) // 2
    pad_hi = (K - 1) - pad_lo
    y = jax.lax.conv_general_dilated(
        x_nchw.astype(jnp.float32), w_oihw.astype(jnp.float32),
        window_strides=(1, 1),
        padding=((pad_lo, pad_hi), (pad_lo, pad_hi)),
        dimension_numbers=("NCHW", "OIHW", "NCHW"))
    mean = jnp.mean(y, axis=(0, 2, 3), keepdims=True)
    var = jnp.mean((y - mean) ** 2, axis=(0, 2, 3), keepdims=True)
    z = (y - mean) * jax.lax.rsqrt(var + eps) * gamma.reshape(1, -1, 1, 1) \
        + beta.reshape(1, -1, 1, 1)
    return jnp.where(z >= 0, z, slope * z)


if __name__ == "__main__":
    # ConvBlock(in_channels=4, out_channels=8, kernel_size=3, stride=1)
    N, Cin, H, W = 2, 4, 16, 16
    Cout, K = 8, 3

    key = jax.random.PRNGKey(0)
    kx, kw = jax.random.split(key)
    x = jax.random.normal(kx, (N, Cin, H, W), dtype=jnp.float32)
    w = jax.random.normal(kw, (Cout, Cin, K, K), dtype=jnp.float32) * 0.1
    gamma = jnp.ones((Cout,), jnp.float32)   # nn.BatchNorm2d default init
    beta = jnp.zeros((Cout,), jnp.float32)

    out = conv_block_forward(x, w, gamma, beta, stride=1)
    out = jax.block_until_ready(out)

    ref = _reference_forward(x, w, gamma, beta)
    assert out.shape == (N, Cout, H, W)
    assert jnp.allclose(out, ref, atol=1e-4, rtol=1e-4), "mismatch vs reference"

    print("KERNEL_OK")
</pallas_src>

<mosaic_0001>
module attributes {stable_mosaic.version = 11 : i64} {
  func.func @conv_bn_lrelu_kernel(%arg0: memref<2x40x256xf32, #tpu.memory_space<vmem>>, %arg1: memref<8x40xf32, #tpu.memory_space<vmem>>, %arg2: memref<8x1xf32, #tpu.memory_space<vmem>>, %arg3: memref<8x1xf32, #tpu.memory_space<vmem>>, %arg4: memref<2x8x256xf32, #tpu.memory_space<vmem>>) attributes {dimension_semantics = [], scalar_prefetch = 0 : i64, scratch_operands = 0 : i64, tpu.core_type = #tpu.core_type<tc>} {
    %c0 = arith.constant 0 : index
    %c0_0 = arith.constant 0 : index
    %0 = vector.load %arg1[%c0, %c0_0] : memref<8x40xf32, #tpu.memory_space<vmem>>, vector<8x40xf32>
    %c0_1 = arith.constant 0 : index
    %c0_2 = arith.constant 0 : index
    %c0_3 = arith.constant 0 : index
    %1 = vector.load %arg0[%c0_1, %c0_2, %c0_3] : memref<2x40x256xf32, #tpu.memory_space<vmem>>, vector<1x40x256xf32>
    %2 = vector.shape_cast %1 : vector<1x40x256xf32> to vector<40x256xf32>
    %cst = arith.constant dense<0.000000e+00> : vector<8x256xf32>
    %3 = tpu.matmul %0, %2, %cst {dimension_numbers = #tpu.dot_dimension_numbers<[1], [0], [0], [1], [0, 0, 1, 1], [], []>} : vector<8x40xf32>, vector<40x256xf32>, vector<8x256xf32> -> vector<8x256xf32>
    %c1 = arith.constant 1 : index
    %c0_4 = arith.constant 0 : index
    %c0_5 = arith.constant 0 : index
    %4 = vector.load %arg0[%c1, %c0_4, %c0_5] : memref<2x40x256xf32, #tpu.memory_space<vmem>>, vector<1x40x256xf32>
    %5 = vector.shape_cast %4 : vector<1x40x256xf32> to vector<40x256xf32>
    %cst_6 = arith.constant dense<0.000000e+00> : vector<8x256xf32>
    %6 = tpu.matmul %0, %5, %cst_6 {dimension_numbers = #tpu.dot_dimension_numbers<[1], [0], [0], [1], [0, 0, 1, 1], [], []>} : vector<8x40xf32>, vector<40x256xf32>, vector<8x256xf32> -> vector<8x256xf32>
    %cst_7 = arith.constant dense<0.000000e+00> : vector<8xf32>
    %7 = vector.multi_reduction <add>, %3, %cst_7 [1] : vector<8x256xf32> to vector<8xf32>
    %8 = vector.shape_cast %7 : vector<8xf32> to vector<8x1xf32>
    %cst_8 = arith.constant 0.000000e+00 : f32
    %9 = vector.broadcast %cst_8 : f32 to vector<8x1xf32>
    %10 = arith.addf %9, %8 : vector<8x1xf32>
    %cst_9 = arith.constant dense<0.000000e+00> : vector<8xf32>
    %11 = vector.multi_reduction <add>, %6, %cst_9 [1] : vector<8x256xf32> to vector<8xf32>
    %12 = vector.shape_cast %11 : vector<8xf32> to vector<8x1xf32>
    %13 = arith.addf %10, %12 : vector<8x1xf32>
    %cst_10 = arith.constant 0.001953125 : f32
    %14 = vector.broadcast %cst_10 : f32 to vector<8x1xf32>
    %15 = arith.mulf %13, %14 : vector<8x1xf32>
    %16 = vector.broadcast %15 : vector<8x1xf32> to vector<8x256xf32>
    %17 = arith.subf %3, %16 : vector<8x256xf32>
    %18 = vector.broadcast %15 : vector<8x1xf32> to vector<8x256xf32>
    %19 = arith.subf %3, %18 : vector<8x256xf32>
    %20 = arith.mulf %17, %19 : vector<8x256xf32>
    %cst_11 = arith.constant dense<0.000000e+00> : vector<8xf32>
    %21 = vector.multi_reduction <add>, %20, %cst_11 [1] : vector<8x256xf32> to vector<8xf32>
    %22 = vector.shape_cast %21 : vector<8xf32> to vector<8x1xf32>
    %cst_12 = arith.constant 0.000000e+00 : f32
    %23 = vector.broadcast %cst_12 : f32 to vector<8x1xf32>
    %24 = arith.addf %23, %22 : vector<8x1xf32>
    %25 = vector.broadcast %15 : vector<8x1xf32> to vector<8x256xf32>
    %26 = arith.subf %6, %25 : vector<8x256xf32>
    %27 = vector.broadcast %15 : vector<8x1xf32> to vector<8x256xf32>
    %28 = arith.subf %6, %27 : vector<8x256xf32>
    %29 = arith.mulf %26, %28 : vector<8x256xf32>
    %cst_13 = arith.constant dense<0.000000e+00> : vector<8xf32>
    %30 = vector.multi_reduction <add>, %29, %cst_13 [1] : vector<8x256xf32> to vector<8xf32>
    %31 = vector.shape_cast %30 : vector<8xf32> to vector<8x1xf32>
    %32 = arith.addf %24, %31 : vector<8x1xf32>
    %cst_14 = arith.constant 0.001953125 : f32
    %33 = vector.broadcast %cst_14 : f32 to vector<8x1xf32>
    %34 = arith.mulf %32, %33 : vector<8x1xf32>
    %c0_15 = arith.constant 0 : index
    %c0_16 = arith.constant 0 : index
    %35 = vector.load %arg2[%c0_15, %c0_16] : memref<8x1xf32, #tpu.memory_space<vmem>>, vector<8x1xf32>
    %cst_17 = arith.constant 9.99999974E-6 : f32
    %36 = vector.broadcast %cst_17 : f32 to vector<8x1xf32>
    %37 = arith.addf %34, %36 : vector<8x1xf32>
    %38 = math.rsqrt %37 : vector<8x1xf32>
    %39 = arith.mulf %35, %38 : vector<8x1xf32>
    %c0_18 = arith.constant 0 : index
    %c0_19 = arith.constant 0 : index
    %40 = vector.load %arg3[%c0_18, %c0_19] : memref<8x1xf32, #tpu.memory_space<vmem>>, vector<8x1xf32>
    %41 = arith.mulf %15, %39 : vector<8x1xf32>
    %42 = arith.subf %40, %41 : vector<8x1xf32>
    %43 = vector.broadcast %39 : vector<8x1xf32> to vector<8x256xf32>
    %44 = arith.mulf %3, %43 : vector<8x256xf32>
    %45 = vector.broadcast %42 : vector<8x1xf32> to vector<8x256xf32>
    %46 = arith.addf %44, %45 : vector<8x256xf32>
    %cst_20 = arith.constant 0.000000e+00 : f32
    %47 = vector.broadcast %cst_20 : f32 to vector<8x256xf32>
    %48 = arith.cmpf oge, %46, %47 : vector<8x256xf32>
    %cst_21 = arith.constant 2.000000e-01 : f32
    %49 = vector.broadcast %cst_21 : f32 to vector<8x256xf32>
    %50 = arith.mulf %49, %46 : vector<8x256xf32>
    %51 = arith.select %48, %46, %50 : vector<8x256xi1>, vector<8x256xf32>
    %c0_22 = arith.constant 0 : index
    %c0_23 = arith.constant 0 : index
    %c0_24 = arith.constant 0 : index
    %52 = vector.load %arg4[%c0_22, %c0_23, %c0_24] : memref<2x8x256xf32, #tpu.memory_space<vmem>>, vector<1x8x256xf32>
    %53 = vector.shape_cast %52 : vector<1x8x256xf32> to vector<8x256xf32>
    %54 = vector.shape_cast %51 : vector<8x256xf32> to vector<1x8x256xf32>
    tpu.vector_store %arg4[%c0_22, %c0_23, %c0_24], %54 {strides = array<i32>} : memref<2x8x256xf32, #tpu.memory_space<vmem>>, vector<1x8x256xf32>,
    %55 = vector.broadcast %39 : vector<8x1xf32> to vector<8x256xf32>
    %56 = arith.mulf %6, %55 : vector<8x256xf32>
    %57 = vector.broadcast %42 : vector<8x1xf32> to vector<8x256xf32>
    %58 = arith.addf %56, %57 : vector<8x256xf32>
    %cst_25 = arith.constant 0.000000e+00 : f32
    %59 = vector.broadcast %cst_25 : f32 to vector<8x256xf32>
    %60 = arith.cmpf oge, %58, %59 : vector<8x256xf32>
    %cst_26 = arith.constant 2.000000e-01 : f32
    %61 = vector.broadcast %cst_26 : f32 to vector<8x256xf32>
    %62 = arith.mulf %61, %58 : vector<8x256xf32>
    %63 = arith.select %60, %58, %62 : vector<8x256xi1>, vector<8x256xf32>
    %c1_27 = arith.constant 1 : index
    %c0_28 = arith.constant 0 : index
    %c0_29 = arith.constant 0 : index
    %64 = vector.load %arg4[%c1_27, %c0_28, %c0_29] : memref<2x8x256xf32, #tpu.memory_space<vmem>>, vector<1x8x256xf32>
    %65 = vector.shape_cast %64 : vector<1x8x256xf32> to vector<8x256xf32>
    %66 = vector.shape_cast %63 : vector<8x256xf32> to vector<1x8x256xf32>
    tpu.vector_store %arg4[%c1_27, %c0_28, %c0_29], %66 {strides = array<i32>} : memref<2x8x256xf32, #tpu.memory_space<vmem>>, vector<1x8x256xf32>,
    return
  }
}

</mosaic_0001>

<llo_original>
// kernel: tpu_custom_call.1
$region0: #{tpu_custom_call.1}
  #allocation0 [shape = 'u32[]', space=smem, size = 0x4, offset = 0x4, fixed_abs, tag = 'smem constant byte address 0x4 - core index']
  #allocation1 [shape = 'u32[144,128]{1,0:T(1,128)}', space=vmem, size = 0x12000, scoped, tag = 'internal scratch']
  %s0 = inlined_call_operand.hbm [shape: f32[2,40,256], index: 0, kind: input, shape index: {}]
  %s1 = inlined_call_operand.vmem [shape: f32[8,40], index: 1, kind: input, shape index: {}]
  %s2 = inlined_call_operand.vmem [shape: f32[8,1], index: 2, kind: input, shape index: {}]
  %s3 = inlined_call_operand.vmem [shape: f32[8,1], index: 3, kind: input, shape index: {}]
  %s4 = inlined_call_operand.hbm [shape: f32[2,8,256], index: 4, kind: output, shape index: {}]
  %s5 = sld [smem:[#allocation0]]
  $region30: #{tpu_custom_call.1} parent=0
    _
  %s7 = ssub.s32 1, %s5
  %s8 = scalar_select 0, %s7, %s5
  $region1: #{tpu_custom_call.1} parent=0
    #allocation2 [shape = 'u8[81920]{0}', space=vmem, size = 0x14000, scoped, tag = 'input window, operand 0, single buffered']
    #allocation3 [shape = 's32[1]{0}', space=sflag, size = 0x4, scoped, tag = 'scoped memory for tpu_custom_call.1']
    #allocation4 [shape = 's32[1]{0}', space=sflag, size = 0x4, scoped, tag = 'scoped memory for tpu_custom_call.1']
    #allocation5 [shape = 'u8[16384]{0}', space=vmem, size = 0x4000, scoped, tag = 'output window, operand 0, single buffered']
    %9 = vsyncpa [#allocation3], 0
    %10 = vsyncpa [#allocation4], 0
    // Predicated region
    $region2: #{tpu_custom_call.1} parent=1 // pred_check
      _
    $region3: #{tpu_custom_call.1} parent=1 // pred_check_branch
      %12 = sbr.rel (0) target = $region5
    $region4: #{tpu_custom_call.1} parent=1 // pred_region
      %s14 = ssub.s32 2560, 2560
      %15 = vsyncadd [#allocation3], %s14
      %s16 = sshll.u32 [#allocation2], 4
      %s17 = int_to_ptr.vmem [resolvable:$true] %s16
      %22 = dma.hbm_to_vmem [thread:$0]  %s0, 2560, %s17, [#allocation3], 256, 256, 16
    $region5: #{tpu_custom_call.1} parent=1 // pred_fallthru
      _
    // Predicated region
    $region6: #{tpu_custom_call.1} parent=1 // pred_check
      _
    $region7: #{tpu_custom_call.1} parent=1 // pred_check_branch
      %24 = sbr.rel (0) target = $region9
    $region8: #{tpu_custom_call.1} parent=1 // pred_region
      _
    $region9: #{tpu_custom_call.1} parent=1 // pred_fallthru
      _
    // Predicated region
    $region10: #{tpu_custom_call.1} parent=1 // pred_check
      _
    $region11: #{tpu_custom_call.1} parent=1 // pred_check_branch
      %26 = sbr.rel (0) target = $region13
    $region12: #{tpu_custom_call.1} parent=1 // pred_region
      _
    $region13: #{tpu_custom_call.1} parent=1 // pred_fallthru
      _
    // Predicated region
    $region14: #{tpu_custom_call.1} parent=1 // pred_check
      _
    $region15: #{tpu_custom_call.1} parent=1 // pred_check_branch
      %28 = sbr.rel (0) target = $region17
    $region16: #{tpu_custom_call.1} parent=1 // pred_region
      _
    $region17: #{tpu_custom_call.1} parent=1 // pred_fallthru
      _
    // Predicated region
    $region18: #{tpu_custom_call.1} parent=1 // pred_check
      _
    $region19: #{tpu_custom_call.1} parent=1 // pred_check_branch
      %30 = sbr.rel (0) target = $region21
    $region20: #{tpu_custom_call.1} parent=1 // pred_region
      %31 = dma.done [#allocation3], 2560
    $region21: #{tpu_custom_call.1} parent=1 // pred_fallthru
      _
    %v32 = vld [vmem:[%s1] sm:$0xff]
    %v33 = vld [vmem:[#allocation2] sm:$0xff]
    %v34 = vld [vmem:[#allocation2 + $0x8] sm:$0xff]
    %v35 = vld [vmem:[#allocation2 + $0x10] sm:$0xff]
    %v36 = vld [vmem:[#allocation2 + $0x18] sm:$0xff]
    %v37 = vld [vmem:[#allocation2 + $0x20] sm:$0xff]
    %v38 = vld [vmem:[#allocation2 + $0x28] sm:$0xff]
    %v39 = vld [vmem:[#allocation2 + $0x30] sm:$0xff]
    %v40 = vld [vmem:[#allocation2 + $0x38] sm:$0xff]
    %v41 = vld [vmem:[#allocation2 + $0x40] sm:$0xff]
    %v42 = vld [vmem:[#allocation2 + $0x48] sm:$0xff]
    %vm43 = vcmask 326656
    %v45 = vsel %vm43, %v32, 0
    %47 = vmatprep.subr.mxu0 %v34
    %48 = vmatpush1.msra.mxu0 %v33
    %49 = vmatprep.subr.mxu0 %v36
    %50 = vmatpush1.msra.mxu0 %v35
    %51 = vmatprep.subr.mxu0 %v38
    %52 = vmatpush1.msra.mxu0 %v37
    %53 = vmatprep.subr.mxu0 %v40
    %54 = vmatpush1.msra.mxu0 %v39
    %55 = vmatprep.subr.mxu0 %v42
    %56 = vmatpush1.msra.mxu0 %v41
    %57 = vmatprep.subr.mxu0 0.0
    %58 = vmatpush1.msra.mxu0 0.0
    %59 = vmatprep.subr.mxu0 0.0
    %60 = vmatpush1.msra.mxu0 0.0
    %61 = vmatprep.subr.mxu0 0.0
    %62 = vmatpush1.msra.mxu0 0.0
    %63 = vmatprep.subr.mxu0 0.0
    %64 = vmatpush1.msra.mxu0 0.0
    %65 = vmatprep.subr.mxu0 0.0
    %66 = vmatpush1.msra.mxu0 0.0
    %67 = vmatprep.subr.mxu0 0.0
    %68 = vmatpush1.msra.mxu0 0.0
    %69 = vmatprep.subr.mxu0 0.0
    %70 = vmatpush1.msra.mxu0 0.0
    %71 = vmatprep.subr.mxu0 0.0
    %72 = vmatpush1.msra.mxu0 0.0
    %73 = vmatprep.subr.mxu0 0.0
    %74 = vmatpush1.msra.mxu0 0.0
    %75 = vmatprep.subr.mxu0 0.0
    %76 = vmatpush1.msra.mxu0 0.0
    %77 = vmatprep.subr.mxu0 0.0
    %78 = vmatpush1.msra.mxu0 0.0
    %79 = vmatprep.subr.mxu0 0.0
    %80 = vmatpush1.msra.mxu0 0.0
    %81 = vmatprep.subr.mxu0 0.0
    %82 = vmatpush1.msra.mxu0 0.0
    %83 = vmatprep.subr.mxu0 0.0
    %84 = vmatpush1.msra.mxu0 0.0
    %85 = vmatprep.subr.mxu0 0.0
    %86 = vmatpush1.msra.mxu0 0.0
    %87 = vmatprep.subr.mxu0 0.0
    %88 = vmatpush1.msra.mxu0 0.0
    %89 = vmatprep.subr.mxu0 0.0
    %90 = vmatpush1.msra.mxu0 0.0
    %91 = vmatprep.subr.mxu0 0.0
    %92 = vmatpush1.msra.mxu0 0.0
    %93 = vmatprep.subr.mxu0 0.0
    %94 = vmatpush1.msra.mxu0 0.0
    %95 = vmatprep.subr.mxu0 0.0
    %96 = vmatpush1.msra.mxu0 0.0
    %97 = vmatprep.subr.mxu0 0.0
    %98 = vmatpush1.msra.mxu0 0.0
    %99 = vmatprep.subr.mxu0 0.0
    %100 = vmatpush1.msra.mxu0 0.0
    %101 = vmatprep.subr.mxu0 0.0
    %102 = vmatpush1.msra.mxu0 0.0
    %103 = vmatprep.subr.mxu0 0.0
    %104 = vmatpush1.msra.mxu0 0.0
    %105 = vmatprep.subr.mxu0 0.0
    %106 = vmatpush1.msra.mxu0 0.0
    %107 = vmatprep.subr.mxu0 0.0
    %108 = vmatpush1.msra.mxu0 0.0
    %109 = vmatprep.subr.mxu0 0.0
    %110 = vmatpush1.msra.mxu0 0.0
    %111 = vmatprep.mubr.f32.mxu0 0.0
    %112 = vmatmul.mubr.f32.gmra.mrb[0].mxu0 %v45
    %v113 = vpop.f32.mrb[0].mxu0
    %v114 = vadd.f32 0.0, %v113
    %v115 = vpop.f32.mrb[0].mxu0
    %v116 = vadd.f32 0.0, %v115
    %117 = vdwg.mxu0
    %s118 = scalar_lea.vmem [#allocation2], 80
    %v119 = vld [vmem:[%s118] sm:$0xff]
    %v120 = vld [vmem:[%s118 + $0x8] sm:$0xff]
    %v121 = vld [vmem:[%s118 + $0x10] sm:$0xff]
    %v122 = vld [vmem:[%s118 + $0x18] sm:$0xff]
    %v123 = vld [vmem:[%s118 + $0x20] sm:$0xff]
    %v124 = vld [vmem:[%s118 + $0x28] sm:$0xff]
    %v125 = vld [vmem:[%s118 + $0x30] sm:$0xff]
    %v126 = vld [vmem:[%s118 + $0x38] sm:$0xff]
    %v127 = vld [vmem:[%s118 + $0x40] sm:$0xff]
    %v128 = vld [vmem:[%s118 + $0x48] sm:$0xff]
    %129 = vmatprep.subr.mxu0 %v120
    %130 = vmatpush1.msra.mxu0 %v119
    %131 = vmatprep.subr.mxu0 %v122
    %132 = vmatpush1.msra.mxu0 %v121
    %133 = vmatprep.subr.mxu0 %v124
    %134 = vmatpush1.msra.mxu0 %v123
    %135 = vmatprep.subr.mxu0 %v126
    %136 = vmatpush1.msra.mxu0 %v125
    %137 = vmatprep.subr.mxu0 %v128
    %138 = vmatpush1.msra.mxu0 %v127
    %139 = vmatprep.subr.mxu0 0.0
    %140 = vmatpush1.msra.mxu0 0.0
    %141 = vmatprep.subr.mxu0 0.0
    %142 = vmatpush1.msra.mxu0 0.0
    %143 = vmatprep.subr.mxu0 0.0
    %144 = vmatpush1.msra.mxu0 0.0
    %145 = vmatprep.subr.mxu0 0.0
    %146 = vmatpush1.msra.mxu0 0.0
    %147 = vmatprep.subr.mxu0 0.0
    %148 = vmatpush1.msra.mxu0 0.0
    %149 = vmatprep.subr.mxu0 0.0
    %150 = vmatpush1.msra.mxu0 0.0
    %151 = vmatprep.subr.mxu0 0.0
    %152 = vmatpush1.msra.mxu0 0.0
    %153 = vmatprep.subr.mxu0 0.0
    %154 = vmatpush1.msra.mxu0 0.0
    %155 = vmatprep.subr.mxu0 0.0
    %156 = vmatpush1.msra.mxu0 0.0
    %157 = vmatprep.subr.mxu0 0.0
    %158 = vmatpush1.msra.mxu0 0.0
    %159 = vmatprep.subr.mxu0 0.0
    %160 = vmatpush1.msra.mxu0 0.0
    %161 = vmatprep.subr.mxu0 0.0
    %162 = vmatpush1.msra.mxu0 0.0
    %163 = vmatprep.subr.mxu0 0.0
    %164 = vmatpush1.msra.mxu0 0.0
    %165 = vmatprep.subr.mxu0 0.0
    %166 = vmatpush1.msra.mxu0 0.0
    %167 = vmatprep.subr.mxu0 0.0
    %168 = vmatpush1.msra.mxu0 0.0
    %169 = vmatprep.subr.mxu0 0.0
    %170 = vmatpush1.msra.mxu0 0.0
    %171 = vmatprep.subr.mxu0 0.0
    %172 = vmatpush1.msra.mxu0 0.0
    %173 = vmatprep.subr.mxu0 0.0
    %174 = vmatpush1.msra.mxu0 0.0
    %175 = vmatprep.subr.mxu0 0.0
    %176 = vmatpush1.msra.mxu0 0.0
    %177 = vmatprep.subr.mxu0 0.0
    %178 = vmatpush1.msra.mxu0 0.0
    %179 = vmatprep.subr.mxu0 0.0
    %180 = vmatpush1.msra.mxu0 0.0
    %181 = vmatprep.subr.mxu0 0.0
    %182 = vmatpush1.msra.mxu0 0.0
    %183 = vmatprep.subr.mxu0 0.0
    %184 = vmatpush1.msra.mxu0 0.0
    %185 = vmatprep.subr.mxu0 0.0
    %186 = vmatpush1.msra.mxu0 0.0
    %187 = vmatprep.subr.mxu0 0.0
    %188 = vmatpush1.msra.mxu0 0.0
    %189 = vmatprep.subr.mxu0 0.0
    %190 = vmatpush1.msra.mxu0 0.0
    %191 = vmatprep.subr.mxu0 0.0
    %192 = vmatpush1.msra.mxu0 0.0
    %193 = vmatprep.mubr.f32.mxu0 0.0
    %194 = vmatmul.mubr.f32.gmra.mrb[0].mxu0 %v45
    %v195 = vpop.f32.mrb[0].mxu0
    %v196 = vadd.f32 0.0, %v195
    %v197 = vpop.f32.mrb[0].mxu0
    %v198 = vadd.f32 0.0, %v197
    %199 = vdwg.mxu0
    %v200 = vadd.f32 %v114, %v116
    %201 = vadd.xlane.f32.xlu0 %v200
    %v202 = vpop.xlane.xlu0 %201
    %v203 = vadd.f32 %v202, 0.0
    %v204 = vadd.f32 %v196, %v198
    %205 = vadd.xlane.f32.xlu0 %v204
    %v206 = vpop.xlane.xlu0 %205
    %v207 = vadd.f32 %v203, %v206
    %v208 = vmul.f32 %v207, 0.001953125
    %v209 = vsub.f32 %v114, %v208
    %v210 = vsub.f32 %v116, %v208
    %v211 = vmul.f32 %v209, %v209
    %v212 = vmul.f32 %v210, %v210
    %v213 = vadd.f32 %v211, %v212
    %214 = vadd.xlane.f32.xlu0 %v213
    %v215 = vpop.xlane.xlu0 %214
    %v216 = vadd.f32 %v215, 0.0
    %v217 = vsub.f32 %v196, %v208
    %v218 = vsub.f32 %v198, %v208
    %v219 = vmul.f32 %v217, %v217
    %v220 = vmul.f32 %v218, %v218
    %v221 = vadd.f32 %v219, %v220
    %222 = vadd.xlane.f32.xlu0 %v221
    %v223 = vpop.xlane.xlu0 %222
    %v224 = vadd.f32 %v216, %v223
    %v225 = vmul.f32 %v224, 0.001953125
    %v226 = vld [vmem:[%s2] sm:$0xff]
    %v227 = vadd.f32 %v225, 1e-05
    %v228 = vrsqrt.pop %v227
    %v229 = vmul.f32 %v226, %v228
    %v230 = vld [vmem:[%s3] sm:$0xff]
    %v231 = vmul.f32 %v208, %v229
    %v232 = vsub.f32 %v230, %v231
    %234 = vset.pattern.permute.xlu0 0
    %235 = vperm.xlu0 %234, %v229
    %v236 = vpop.permute.xlu0 %235
    %v238 = vmul.f32 %v114, %v236
    %v239 = vmul.f32 %v116, %v236
    %241 = vset.pattern.permute.xlu0 0
    %242 = vperm.xlu0 %241, %v232
    %v243 = vpop.permute.xlu0 %242
    %v245 = vadd.f32 %v238, %v243
    %v246 = vadd.f32 %v239, %v243
    %vm247 = vcmp.ge.f32.partialorder %v245, 0.0
    %vm248 = vcmp.ge.f32.partialorder %v246, 0.0
    %v249 = vmul.f32 %v245, 0.2
    %v250 = vmul.f32 %v246, 0.2
    %v251 = vsel %vm247, %v245, %v249
    %v252 = vsel %vm248, %v246, %v250
    %253 = vst [vmem:[#allocation5] sm:$0xff] %v251
    %254 = vst [vmem:[#allocation5 + $0x8] sm:$0xff] %v252
    %v255 = vmul.f32 %v196, %v236
    %v256 = vmul.f32 %v198, %v236
    %v257 = vadd.f32 %v255, %v243
    %v258 = vadd.f32 %v256, %v243
    %vm259 = vcmp.ge.f32.partialorder %v257, 0.0
    %vm260 = vcmp.ge.f32.partialorder %v258, 0.0
    %v261 = vmul.f32 %v257, 0.2
    %v262 = vmul.f32 %v258, 0.2
    %v263 = vsel %vm259, %v257, %v261
    %v264 = vsel %vm260, %v258, %v262
    %s265 = scalar_lea.vmem [#allocation5], 16
    %266 = vst [vmem:[%s265] sm:$0xff] %v263
    %267 = vst [vmem:[%s265 + $0x8] sm:$0xff] %v264
    // Predicated region
    $region22: #{tpu_custom_call.1} parent=1 // pred_check
      _
    $region23: #{tpu_custom_call.1} parent=1 // pred_check_branch
      %269 = sbr.rel (0) target = $region25
    $region24: #{tpu_custom_call.1} parent=1 // pred_region
      %s271 = ssub.s32 512, 512
      %272 = vsyncadd [#allocation4], %s271
      %s273 = sshll.u32 [#allocation5], 4
      %s274 = int_to_ptr.vmem [resolvable:$true] %s273
      %279 = dma.vmem_to_hbm [thread:$0]  %s274, 512, %s4, [#allocation4], 256, 256, 16
    $region25: #{tpu_custom_call.1} parent=1 // pred_fallthru
      _
    // Predicated region
    $region26: #{tpu_custom_call.1} parent=1 // pred_check
      _
    $region27: #{tpu_custom_call.1} parent=1 // pred_check_branch
      %281 = sbr.rel (0) target = $region29
    $region28: #{tpu_custom_call.1} parent=1 // pred_region
      %282 = dma.done [#allocation4], 512
    $region29: #{tpu_custom_call.1} parent=1 // pred_fallthru
      _
    %283 = vsyncpa [#allocation3], 1
    %284 = vsyncpa [#allocation4], 1

</llo_original>
